<compile_context>
chip_gen: v5e
topology: v5e:2x2
jax: 0.10.0
libtpu: 0.0.40
codegen_flags: <defaults>
</compile_context>

<pallas_src>
import functools

import jax
import jax.numpy as jnp
from jax.experimental import pallas as pl
from jax.experimental.pallas import tpu as pltpu

# Packed-parameter layout (rows, 128 lanes wide, zero padded):
#   rows   0:6   -> fc1 weight  (6,36)  at [0:6,  0:36]
#   row    8     -> fc1 bias    (36,)   at [8,    0:36]
#   rows  16:144 -> fc2 weight  (36,2)  at [16:52, 0:2]
#   row  144     -> fc2 bias    (2,)    at [144,  0:2]
_P_ROWS = 152
_LANES = 128


def _round_up(x, m):
    return ((x + m - 1) // m) * m


def mlp_kernel(x_ref, p_ref, o_ref):
    w1 = p_ref[0:6, :]        # (6, 128)   fc1 weight (lanes >=36 are zero)
    b1 = p_ref[8:9, :]        # (1, 128)   fc1 bias   (broadcasts in the add)
    w2 = p_ref[16:144, :]     # (128, 128) fc2 weight (zero padded)
    b2 = p_ref[144:145, :]    # (1, 128)   fc2 bias

    # fc1 + tanh (padded lanes: zero weight + zero bias -> tanh(0)=0).
    h = jnp.tanh(jnp.dot(x_ref[...], w1, preferred_element_type=jnp.float32) + b1)
    # fc2; only the first 2 lanes are meaningful -> store just those.
    y = jnp.dot(h, w2, preferred_element_type=jnp.float32) + b2
    o_ref[...] = y[:, :2].astype(o_ref.dtype)


def pack_params(w1, b1, w2, b2):
    """Pack all weights/biases into one (152, 128) f32 buffer. Call once."""
    p = jnp.zeros((_P_ROWS, _LANES), jnp.float32)
    p = p.at[0:6, 0:36].set(w1.astype(jnp.float32))
    p = p.at[8, 0:36].set(b1.reshape(36).astype(jnp.float32))
    p = p.at[16:52, 0:2].set(w2.astype(jnp.float32))
    p = p.at[144, 0:2].set(b2.reshape(2).astype(jnp.float32))
    return p


@functools.partial(jax.jit, static_argnames=("tile_b",))
def net_forward(x, params, *, tile_b=2048):
    B, K = x.shape                      # K == 6
    x = x.astype(jnp.float32)

    # Only tiny batches (< 8 rows) get padded so the batch block (multiple of
    # 8 sublanes) never exceeds the array extent; larger batches rely on
    # Pallas' ragged-last-block handling (rows are independent).
    b = max(B, 8)
    if b != B:
        x = jnp.zeros((b, K), jnp.float32).at[:B, :].set(x)

    # Big tiles amortize per-step overhead; cap so that large batches produce
    # >= 2 grid steps (both v7x TensorCores get work). Always a multiple of 8.
    tb = min(tile_b, _round_up(-(-b // 2), 8))
    grid = (pl.cdiv(b, tb),)

    out = pl.pallas_call(
        mlp_kernel,
        out_shape=jax.ShapeDtypeStruct((b, 2), jnp.float32),
        grid=grid,
        in_specs=[
            # Activations: tiled over the batch grid; last dim == full dim (6).
            pl.BlockSpec((tb, K), lambda i: (i, 0)),
            # Packed params: constant index_map -> one DMA, VMEM-resident.
            pl.BlockSpec((_P_ROWS, _LANES), lambda i: (0, 0)),
        ],
        # Exact 2-lane output: masked vst is cheap, HBM writeback is 8 B/row.
        out_specs=pl.BlockSpec((tb, 2), lambda i: (i, 0)),
        compiler_params=pltpu.CompilerParams(
            dimension_semantics=("parallel",),
        ),
    )(x, params)

    return out[:B]


def init_params(key):
    # Deterministic init mimicking nn.Linear's uniform(-1/sqrt(fan_in), ...).
    # Weights stored transposed vs. PyTorch: (in_features, out_features).
    k1, k2, k3, k4 = jax.random.split(key, 4)
    lim1 = 1.0 / jnp.sqrt(6.0)
    lim2 = 1.0 / jnp.sqrt(36.0)
    w1 = jax.random.uniform(k1, (6, 36), jnp.float32, -lim1, lim1)
    b1 = jax.random.uniform(k2, (1, 36), jnp.float32, -lim1, lim1)
    w2 = jax.random.uniform(k3, (36, 2), jnp.float32, -lim2, lim2)
    b2 = jax.random.uniform(k4, (1, 2), jnp.float32, -lim2, lim2)
    return w1, b1, w2, b2


if __name__ == "__main__":
    key = jax.random.PRNGKey(0)
    kx, kp = jax.random.split(key)
    w1, b1, w2, b2 = init_params(kp)
    params = pack_params(w1, b1, w2, b2)   # packed once, reused every forward

    # Tiny batch (row-pad path), 8-row batch (single aligned tile), and a
    # larger batch exercising the 2-step parallel grid + ragged last block.
    for B in (2, 8, 300):
        kx, sub = jax.random.split(kx)
        x = jax.random.normal(sub, (B, 6), jnp.float32)

        out = jax.block_until_ready(net_forward(x, params))

        # Reference check in plain JAX.
        ref = jnp.tanh(x @ w1 + b1) @ w2 + b2
        assert out.shape == (B, 2)
        assert jnp.allclose(out, ref, atol=1e-5), f"mismatch vs reference at B={B}"

    # TODO(synk): Net.predict (softmax + per-row thresholded class pick) is
    # host-side post-processing, intentionally not part of the kernel.
    print("KERNEL_OK")
</pallas_src>

<mosaic_0001>
module attributes {stable_mosaic.version = 11 : i64} {
  func.func @mlp_kernel(%arg0: i32, %arg1: memref<8x6xf32, #tpu.memory_space<vmem>>, %arg2: memref<152x128xf32, #tpu.memory_space<vmem>>, %arg3: memref<8x2xf32, #tpu.memory_space<vmem>>) attributes {dimension_semantics = [#tpu.dimension_semantics<parallel>], iteration_bounds = array<i64: 1>, scalar_prefetch = 0 : i64, scratch_operands = 0 : i64, tpu.core_type = #tpu.core_type<tc>, window_params = [{transform_indices = @transform_0, window_bounds = array<i64: 8, 6>}, {pipeline_mode = #tpu.pipeline_mode<synchronous>, transform_indices = @transform_1, window_bounds = array<i64: 152, 128>}, {transform_indices = @transform_2, window_bounds = array<i64: 8, 2>}]} {
    %c0 = arith.constant 0 : index
    %c0_0 = arith.constant 0 : index
    %0 = vector.load %arg2[%c0, %c0_0] : memref<152x128xf32, #tpu.memory_space<vmem>>, vector<6x128xf32>
    %c8 = arith.constant 8 : index
    %c0_1 = arith.constant 0 : index
    %1 = vector.load %arg2[%c8, %c0_1] : memref<152x128xf32, #tpu.memory_space<vmem>>, vector<1x128xf32>
    %c16 = arith.constant 16 : index
    %c0_2 = arith.constant 0 : index
    %2 = vector.load %arg2[%c16, %c0_2] : memref<152x128xf32, #tpu.memory_space<vmem>>, vector<128x128xf32>
    %c144 = arith.constant 144 : index
    %c0_3 = arith.constant 0 : index
    %3 = vector.load %arg2[%c144, %c0_3] : memref<152x128xf32, #tpu.memory_space<vmem>>, vector<1x128xf32>
    %c0_4 = arith.constant 0 : index
    %c0_5 = arith.constant 0 : index
    %4 = vector.load %arg1[%c0_4, %c0_5] : memref<8x6xf32, #tpu.memory_space<vmem>>, vector<8x6xf32>
    %cst = arith.constant dense<0.000000e+00> : vector<8x128xf32>
    %5 = tpu.matmul %4, %0, %cst {dimension_numbers = #tpu.dot_dimension_numbers<[1], [0], [0], [1], [0, 0, 1, 1], [], []>} : vector<8x6xf32>, vector<6x128xf32>, vector<8x128xf32> -> vector<8x128xf32>
    %6 = vector.broadcast %1 : vector<1x128xf32> to vector<8x128xf32>
    %7 = arith.addf %5, %6 : vector<8x128xf32>
    %8 = math.tanh %7 : vector<8x128xf32>
    %cst_6 = arith.constant dense<0.000000e+00> : vector<8x128xf32>
    %9 = tpu.matmul %8, %2, %cst_6 {dimension_numbers = #tpu.dot_dimension_numbers<[1], [0], [0], [1], [0, 0, 1, 1], [], []>} : vector<8x128xf32>, vector<128x128xf32>, vector<8x128xf32> -> vector<8x128xf32>
    %10 = vector.broadcast %3 : vector<1x128xf32> to vector<8x128xf32>
    %11 = arith.addf %9, %10 : vector<8x128xf32>
    %12 = vector.extract_strided_slice %11 {offsets = [0, 0], sizes = [8, 2], strides = [1, 1]} : vector<8x128xf32> to vector<8x2xf32>
    %c0_7 = arith.constant 0 : index
    %c0_8 = arith.constant 0 : index
    %13 = vector.load %arg3[%c0_7, %c0_8] : memref<8x2xf32, #tpu.memory_space<vmem>>, vector<8x2xf32>
    tpu.vector_store %arg3[%c0_7, %c0_8], %12 {strides = array<i32>} : memref<8x2xf32, #tpu.memory_space<vmem>>, vector<8x2xf32>,
    return
  }
  func.func @transform_0(%arg0: i32) -> (i32, i32) {
    %c0_i32 = arith.constant 0 : i32
    %c0_i32_0 = arith.constant 0 : i32
    return %arg0, %c0_i32 : i32, i32
  }
  func.func @transform_1(%arg0: i32) -> (i32, i32) {
    %c0_i32 = arith.constant 0 : i32
    %c0_i32_0 = arith.constant 0 : i32
    %c0_i32_1 = arith.constant 0 : i32
    return %c0_i32, %c0_i32_0 : i32, i32
  }
  func.func @transform_2(%arg0: i32) -> (i32, i32) {
    %c0_i32 = arith.constant 0 : i32
    %c0_i32_0 = arith.constant 0 : i32
    return %arg0, %c0_i32 : i32, i32
  }
}

</mosaic_0001>

<llo_original>
// kernel: net_forward.1
$region0: #{net_forward.1}
  #allocation0 [shape = 'u32[]', space=smem, size = 0x4, offset = 0x4, fixed_abs, tag = 'smem constant byte address 0x4 - core index']
  #allocation1 [shape = 'u32[72,128]{1,0:T(1,128)}', space=vmem, size = 0x9000, scoped, tag = 'internal scratch']
  %s0 = inlined_call_operand.vmem [shape: f32[8,6], index: 0, kind: input, shape index: {}]
  %s1 = inlined_call_operand.hbm [shape: f32[152,128], index: 1, kind: input, shape index: {}]
  %s2 = inlined_call_operand.vmem [shape: f32[8,2], index: 2, kind: output, shape index: {}]
  %s3 = sld [smem:[#allocation0]]
  $region22: #{net_forward.1} parent=0
    _
  %s5 = ssub.s32 1, %s3
  %s6 = scalar_select 0, %s5, %s3
  $region1: #{net_forward.1} parent=0
    #allocation2 [shape = 'u8[77824]{0}', space=vmem, size = 0x13000, scoped, tag = 'input window, operand 1, single buffered']
    #allocation3 [shape = 's32[1]{0}', space=sflag, size = 0x4, scoped, tag = 'scoped memory for net_forward.1']
    %7 = vsyncpa [#allocation3], 0
    // Predicated region
    $region2: #{net_forward.1} parent=1 // pred_check
      _
    $region3: #{net_forward.1} parent=1 // pred_check_branch
      %9 = sbr.rel (0) target = $region5
    $region4: #{net_forward.1} parent=1 // pred_region
      _
    $region5: #{net_forward.1} parent=1 // pred_fallthru
      _
    // Predicated region
    $region6: #{net_forward.1} parent=1 // pred_check
      _
    $region7: #{net_forward.1} parent=1 // pred_check_branch
      %11 = sbr.rel (0) target = $region9
    $region8: #{net_forward.1} parent=1 // pred_region
      %13 = vsyncadd [#allocation3], 0
      %s14 = sshll.u32 %s1, 4
      %s15 = int_to_ptr.hbm [resolvable:$true] %s14
      %s16 = sshll.u32 [#allocation2], 4
      %s17 = int_to_ptr.vmem [resolvable:$true] %s16
      %22 = dma.hbm_to_vmem [thread:$0]  %s15, 2432, %s17, [#allocation3], 128, 128, 8
    $region9: #{net_forward.1} parent=1 // pred_fallthru
      _
    // Predicated region
    $region10: #{net_forward.1} parent=1 // pred_check
      _
    $region11: #{net_forward.1} parent=1 // pred_check_branch
      %24 = sbr.rel (0) target = $region13
    $region12: #{net_forward.1} parent=1 // pred_region
      %26 = dma.done [#allocation3], 2432
    $region13: #{net_forward.1} parent=1 // pred_fallthru
      _
    %v27 = vld [vmem:[#allocation2] sm:$0x3f]
    %v28 = vld [vmem:[#allocation2 + $0x8] sm:$0x1]
    %v29 = vld [vmem:[#allocation2 + $0x10] sm:$0xff]
    %v30 = vld [vmem:[#allocation2 + $0x18] sm:$0xff]
    %v31 = vld [vmem:[#allocation2 + $0x20] sm:$0xff]
    %v32 = vld [vmem:[#allocation2 + $0x28] sm:$0xff]
    %v33 = vld [vmem:[#allocation2 + $0x30] sm:$0xff]
    %v34 = vld [vmem:[#allocation2 + $0x38] sm:$0xff]
    %v35 = vld [vmem:[#allocation2 + $0x40] sm:$0xff]
    %v36 = vld [vmem:[#allocation2 + $0x48] sm:$0xff]
    %v37 = vld [vmem:[#allocation2 + $0x50] sm:$0xff]
    %v38 = vld [vmem:[#allocation2 + $0x58] sm:$0xff]
    %v39 = vld [vmem:[#allocation2 + $0x60] sm:$0xff]
    %v40 = vld [vmem:[#allocation2 + $0x68] sm:$0xff]
    %v41 = vld [vmem:[#allocation2 + $0x70] sm:$0xff]
    %v42 = vld [vmem:[#allocation2 + $0x78] sm:$0xff]
    %v43 = vld [vmem:[#allocation2 + $0x80] sm:$0xff]
    %v44 = vld [vmem:[#allocation2 + $0x88] sm:$0xff]
    %v45 = vld [vmem:[#allocation2 + $0x90] sm:$0x1]
    %v46 = vld [vmem:[%s0] sm:$0xff]
    %v47 = vperm.slane %v28, 0
    %vm48 = vcmask 48128
    %v50 = vsel %vm48, %v46, 0
    %vm52 = vcmask 1045504
    %v54 = vsel %vm52, %v27, 0
    %56 = vmatpush.msra.mxu0 0.0
    %57 = vmatpush.msra.mxu0 0.0
    %58 = vmatpush.msra.mxu0 0.0
    %59 = vmatpush.msra.mxu0 0.0
    %60 = vmatpush.msra.mxu0 0.0
    %61 = vmatpush.msra.mxu0 0.0
    %62 = vmatpush.msra.mxu0 0.0
    %63 = vmatpush.msra.mxu0 0.0
    %64 = vmatpush.msra.mxu0 0.0
    %65 = vmatpush.msra.mxu0 0.0
    %66 = vmatpush.msra.mxu0 0.0
    %67 = vmatpush.msra.mxu0 0.0
    %68 = vmatpush.msra.mxu0 0.0
    %69 = vmatpush.msra.mxu0 0.0
    %70 = vmatpush.msra.mxu0 0.0
    %71 = vmatpush.msra.mxu0 %v54
    %72 = vmatmul.f32.gmra.mxu0 %v50
    %v73 = vpop.f32.mrf.mxu0
    %v74 = vadd.f32 %v47, %v73
    %75 = vdwg.mxu0
    %v76 = vtanh.pop %v74
    %v77 = vperm.slane %v45, 0
    %78 = vmatpush.msra.mxu0 %v44
    %79 = vmatpush.msra.mxu0 %v43
    %80 = vmatpush.msra.mxu0 %v42
    %81 = vmatpush.msra.mxu0 %v41
    %82 = vmatpush.msra.mxu0 %v40
    %83 = vmatpush.msra.mxu0 %v39
    %84 = vmatpush.msra.mxu0 %v38
    %85 = vmatpush.msra.mxu0 %v37
    %86 = vmatpush.msra.mxu0 %v36
    %87 = vmatpush.msra.mxu0 %v35
    %88 = vmatpush.msra.mxu0 %v34
    %89 = vmatpush.msra.mxu0 %v33
    %90 = vmatpush.msra.mxu0 %v32
    %91 = vmatpush.msra.mxu0 %v31
    %92 = vmatpush.msra.mxu0 %v30
    %93 = vmatpush.msra.mxu0 %v29
    %94 = vmatmul.f32.gmra.mxu0 %v76
    %v95 = vpop.f32.mrf.mxu0
    %v96 = vadd.f32 %v77, %v95
    %97 = vdwg.mxu0
    %vm98 = vcmask 15360
    %99 = vst.msk [vmem:[%s2] sm:$0xff] %vm98, %v96
    // Predicated region
    $region14: #{net_forward.1} parent=1 // pred_check
      _
    $region15: #{net_forward.1} parent=1 // pred_check_branch
      %101 = sbr.rel (0) target = $region17
    $region16: #{net_forward.1} parent=1 // pred_region
      _
    $region17: #{net_forward.1} parent=1 // pred_fallthru
      _
    // Predicated region
    $region18: #{net_forward.1} parent=1 // pred_check
      _
    $region19: #{net_forward.1} parent=1 // pred_check_branch
      %103 = sbr.rel (0) target = $region21
    $region20: #{net_forward.1} parent=1 // pred_region
      _
    $region21: #{net_forward.1} parent=1 // pred_fallthru
      _
    %104 = vsyncpa [#allocation3], 1

</llo_original>
